<compile_context>
chip_gen: v6e
topology: v6e:2x2x1
jax: 0.10.0
libtpu: 0.0.40
codegen_flags: <defaults>
</compile_context>

<pallas_src>
import jax
import jax.numpy as jnp
import numpy as np
from jax.experimental import pallas as pl
from jax.experimental.pallas import tpu as pltpu


# --------------------------------------------------------------------------- #
# helpers
# --------------------------------------------------------------------------- #
def _pick_tile_b(batch, tile_b=None):
    """Batch tile: full batch when small (always layout-legal), else 256 rows."""
    if tile_b is not None:
        return tile_b
    if batch <= 256:
        return batch          # block dim == full array dim -> always legal
    return 256                # multiple of 8 sublanes, VMEM-friendly


_COMPILER_PARAMS = pltpu.CompilerParams(
    dimension_semantics=("parallel",),        # batch tiles are independent (v7x: 2 TCs)
    vmem_limit_bytes=32 * 1024 * 1024,        # safe on v5e/v6e (128 MiB) and v7x (64 MiB)
)


# --------------------------------------------------------------------------- #
# Kernel 1: encode + gate logits (fused so hidden is not re-read for routing)
# --------------------------------------------------------------------------- #
def _encode_gate_kernel(x_ref, w_enc_ref, b_enc_ref, w_gate_ref, b_gate_ref,
                        h_ref, logits_ref):
    # hidden = x @ W_enc^T + b_enc   (weights pre-transposed -> plain [M,K]x[K,N])
    h = jnp.dot(x_ref[...], w_enc_ref[...],
                preferred_element_type=jnp.float32) + b_enc_ref[...]
    h_ref[...] = h.astype(h_ref.dtype)
    # gate logits = hidden @ W_gate^T + b_gate
    logits_ref[...] = (
        jnp.dot(h.astype(w_gate_ref.dtype), w_gate_ref[...],
                preferred_element_type=jnp.float32) + b_gate_ref[...]
    ).astype(logits_ref.dtype)


def encode_and_gate(x, w_enc_t, b_enc, w_gate_t, b_gate, *,
                    compute_dtype=jnp.float32, tile_b=None):
    B, Fin = x.shape
    D = w_enc_t.shape[1]
    E = w_gate_t.shape[1]
    tb = _pick_tile_b(B, tile_b)
    grid = (pl.cdiv(B, tb),)
    return pl.pallas_call(
        _encode_gate_kernel,
        out_shape=(jax.ShapeDtypeStruct((B, D), compute_dtype),   # hidden
                   jax.ShapeDtypeStruct((B, E), jnp.float32)),    # gate logits
        grid=grid,
        in_specs=[
            pl.BlockSpec((tb, Fin), lambda i: (i, 0)),    # x tile
            pl.BlockSpec((Fin, D), lambda i: (0, 0)),     # W_enc^T (resident)
            pl.BlockSpec((1, D), lambda i: (0, 0)),       # b_enc
            pl.BlockSpec((D, E), lambda i: (0, 0)),       # W_gate^T
            pl.BlockSpec((1, E), lambda i: (0, 0)),       # b_gate
        ],
        out_specs=(pl.BlockSpec((tb, D), lambda i: (i, 0)),
                   pl.BlockSpec((tb, E), lambda i: (i, 0))),
        compiler_params=_COMPILER_PARAMS,
    )(x.astype(compute_dtype), w_enc_t.astype(compute_dtype),
      b_enc.reshape(1, D).astype(jnp.float32),
      w_gate_t.astype(compute_dtype), b_gate.reshape(1, E).astype(jnp.float32))


# --------------------------------------------------------------------------- #
# Kernel 2: fused dense MoE expert MLP (two big matmuls per batch tile)
# --------------------------------------------------------------------------- #
def _fused_experts_kernel(h_ref, gate_ref, w_in_ref, b_in_ref, w_out_ref,
                          g_ref, gt_ref, o_ref):
    # pre-activations of ALL experts at once: [tB, E*H]
    pre = jnp.dot(h_ref[...], w_in_ref[...],
                  preferred_element_type=jnp.float32) + b_in_ref[...]

    # SoLU per expert without any in-kernel reshape:
    # softmax is shift-invariant, so subtract the global row max, then form the
    # per-expert denominators with the group-indicator matrix G [E*H, E].
    m = jnp.max(pre, axis=-1, keepdims=True)                                  # [tB, 1]
    ex = jnp.exp(pre - m)                                                     # [tB, E*H]
    group_sum = jnp.dot(ex, g_ref[...], preferred_element_type=jnp.float32)   # [tB, E]

    # per-expert scale = gate_e / group_sum_e  (reciprocal on the EUP slot),
    # broadcast back over the H lanes of each expert via G^T.
    scale = pl.reciprocal(group_sum, approx=True) * gate_ref[...]             # [tB, E]
    scale_full = jnp.dot(scale, gt_ref[...],
                         preferred_element_type=jnp.float32)                  # [tB, E*H]

    acts = ex * scale_full * pre          # = gate_e * softmax_group(pre) * pre

    # weighted sum over selected experts == one big [tB, E*H] x [E*H, F] matmul
    # (non-selected experts carry gate weight 0).  experts_bias is unused in forward.
    o_ref[...] = jnp.dot(acts.astype(w_out_ref.dtype), w_out_ref[...],
                         preferred_element_type=jnp.float32).astype(o_ref.dtype)


def moe_experts_fused(hidden, gate_dense, w_in_all, b_in_all, w_out_all, group_mat,
                      *, compute_dtype=jnp.float32, tile_b=None):
    B, D = hidden.shape
    EH, Fout = w_out_all.shape
    E = gate_dense.shape[1]
    tb = _pick_tile_b(B, tile_b)
    grid = (pl.cdiv(B, tb),)
    return pl.pallas_call(
        _fused_experts_kernel,
        out_shape=jax.ShapeDtypeStruct((B, Fout), jnp.float32),
        grid=grid,
        in_specs=[
            pl.BlockSpec((tb, D), lambda i: (i, 0)),       # hidden tile
            pl.BlockSpec((tb, E), lambda i: (i, 0)),       # dense gate weights tile
            pl.BlockSpec((D, EH), lambda i: (0, 0)),       # W_in_all  (resident)
            pl.BlockSpec((1, EH), lambda i: (0, 0)),       # b_in_all
            pl.BlockSpec((EH, Fout), lambda i: (0, 0)),    # W_out_all (resident)
            pl.BlockSpec((EH, E), lambda i: (0, 0)),       # G  (group indicator)
            pl.BlockSpec((E, EH), lambda i: (0, 0)),       # G^T
        ],
        out_specs=pl.BlockSpec((tb, Fout), lambda i: (i, 0)),
        compiler_params=_COMPILER_PARAMS,
    )(hidden.astype(compute_dtype), gate_dense.astype(jnp.float32),
      w_in_all.astype(compute_dtype), b_in_all.astype(jnp.float32),
      w_out_all.astype(compute_dtype),
      group_mat.astype(jnp.float32), group_mat.T.astype(jnp.float32))


# --------------------------------------------------------------------------- #
# full forward
# --------------------------------------------------------------------------- #
def moe_autoencoder_forward(x, params, k_experts, *,
                            compute_dtype=jnp.float32, tile_b=None):
    w_in = params["w_in"]                       # [E, H, D]   (torch Linear layout)
    w_out = params["w_out"]                     # [E, F, H]
    E, H, D = w_in.shape
    Fout = w_out.shape[1]
    B = x.shape[0]
    tb = _pick_tile_b(B, tile_b)

    # --- one-time layout plumbing (cheap, happens outside the kernels) ---------
    w_enc_t = params["w_enc"].T                                       # [F_in, D]
    w_gate_t = params["w_gate"].T                                     # [D, E]
    w_in_all = jnp.transpose(w_in, (2, 0, 1)).reshape(D, E * H)       # [D, E*H]
    b_in_all = params["b_in"].reshape(1, E * H)                       # [1, E*H]
    w_out_all = jnp.transpose(w_out, (0, 2, 1)).reshape(E * H, Fout)  # [E*H, F]
    group_mat = jnp.repeat(jnp.eye(E, dtype=jnp.float32), H, axis=0)  # [E*H, E]

    # --- Pallas kernel 1: encode + gate logits ---------------------------------
    hidden, logits = encode_and_gate(
        x, w_enc_t, params["b_enc"], w_gate_t, params["b_gate"],
        compute_dtype=compute_dtype, tile_b=tb)

    # --- routing glue (tiny: softmax, top-k, counts, aux loss) ------------------
    expert_probs = jax.nn.softmax(logits, axis=-1)
    mean_expert_probs = expert_probs.mean(axis=0)
    k_probs, k_idx = jax.lax.top_k(expert_probs, k_experts)
    k_weights = k_probs / jnp.sum(k_probs, axis=-1, keepdims=True)

    onehot = jax.nn.one_hot(k_idx, E, dtype=jnp.float32)              # [B, k, E]
    expert_counts = jnp.sum(onehot, axis=(0, 1))                      # bincount
    load_balancing_loss = E * jnp.sum(expert_counts / B * mean_expert_probs)

    # scatter normalized top-k weights into a dense [B, E] gate (zeros elsewhere)
    gate_dense = jnp.einsum("bke,bk->be", onehot, k_weights)

    # --- Pallas kernel 2: fused dense expert MLP --------------------------------
    outputs = moe_experts_fused(
        hidden, gate_dense, w_in_all, b_in_all, w_out_all, group_mat,
        compute_dtype=compute_dtype, tile_b=tb)
    return outputs, load_balancing_loss


# --------------------------------------------------------------------------- #
# pure-JAX reference (eval-mode semantics)
# --------------------------------------------------------------------------- #
def reference_forward(x, params, k_experts):
    n_experts = params["w_gate"].shape[0]
    batch = x.shape[0]
    hidden = x @ params["w_enc"].T + params["b_enc"]
    logits = hidden @ params["w_gate"].T + params["b_gate"]
    probs = jax.nn.softmax(logits, axis=-1)
    mean_probs = probs.mean(axis=0)
    k_probs, k_idx = jax.lax.top_k(probs, k_experts)
    k_w = k_probs / jnp.sum(k_probs, axis=-1, keepdims=True)
    counts = jnp.sum(
        jax.nn.one_hot(k_idx.reshape(-1), n_experts, dtype=jnp.float32), axis=0)
    load_loss = n_experts * jnp.sum(counts / batch * mean_probs)

    w_in_sel = params["w_in"][k_idx]      # [B, k, H, D]
    b_in_sel = params["b_in"][k_idx]      # [B, k, H]
    w_out_sel = params["w_out"][k_idx]    # [B, k, F, H]
    pre = jnp.einsum("bkhd,bd->bkh", w_in_sel, hidden) + b_in_sel
    acts = jax.nn.softmax(pre, axis=-1) * pre
    o = jnp.einsum("bkfh,bkh->bkf", w_out_sel, acts)
    out = jnp.sum(o * k_w[..., None], axis=1)
    return out, load_loss, hidden, logits


# --------------------------------------------------------------------------- #
# main
# --------------------------------------------------------------------------- #
if __name__ == "__main__":
    # small shapes consistent with MoeAutoencoder(n_features, d_model, ...);
    # chosen so E*d_expert and n_features are lane-dense (multiples of 128).
    batch = 16
    n_features = 128
    d_model = 64
    n_experts = 4
    d_expert = 32
    k_experts = 2
    w_in_bias_init = 0.0

    key = jax.random.PRNGKey(0)
    ks = jax.random.split(key, 6)
    params = {
        # encode: Linear(n_features -> d_model)
        "w_enc": 0.1 * jax.random.normal(ks[0], (d_model, n_features), jnp.float32),
        "b_enc": 0.1 * jax.random.normal(ks[1], (d_model,), jnp.float32),
        # gate: Linear(d_model -> n_experts)
        "w_gate": 0.1 * jax.random.normal(ks[2], (n_experts, d_model), jnp.float32),
        "b_gate": jnp.zeros((n_experts,), jnp.float32),
        # experts_w_in: n_experts x Linear(d_model -> d_expert), bias filled w/ 0.0
        "w_in": 0.1 * jax.random.normal(ks[3], (n_experts, d_expert, d_model), jnp.float32),
        "b_in": jnp.full((n_experts, d_expert), w_in_bias_init, jnp.float32),
        # experts_w_out: n_experts x Linear(d_expert -> n_features, no bias)
        "w_out": 0.1 * jax.random.normal(ks[4], (n_experts, n_features, d_expert), jnp.float32),
        # note: the `experts_bias` parameter exists in the module but is unused in forward
    }
    x = jax.random.normal(ks[5], (batch, n_features), jnp.float32)

    # ---- f32 path: correctness check ----------------------------------------
    fwd = jax.jit(lambda xx: moe_autoencoder_forward(xx, params, k_experts))
    out, load_loss = fwd(x)
    jax.block_until_ready((out, load_loss))

    enc = jax.jit(lambda xx: encode_and_gate(
        xx, params["w_enc"].T, params["b_enc"], params["w_gate"].T, params["b_gate"],
        compute_dtype=jnp.float32, tile_b=batch))
    hid, logt = enc(x)
    jax.block_until_ready((hid, logt))

    with jax.default_matmul_precision("highest"):
        ref_out, ref_loss, ref_hidden, ref_logits = reference_forward(x, params, k_experts)
        ref_out, ref_loss = jax.block_until_ready((ref_out, ref_loss))

    # encode/gate kernel: no approximations -> tight-ish check
    np.testing.assert_allclose(np.asarray(hid), np.asarray(ref_hidden),
                               rtol=5e-3, atol=1e-4)
    np.testing.assert_allclose(np.asarray(logt), np.asarray(ref_logits),
                               rtol=5e-3, atol=1e-4)
    # fused expert kernel uses pl.reciprocal(approx=True) -> slightly looser tolerance
    np.testing.assert_allclose(np.asarray(out), np.asarray(ref_out),
                               rtol=1e-2, atol=3e-4)
    np.testing.assert_allclose(np.asarray(load_loss), np.asarray(ref_loss),
                               rtol=1e-3, atol=1e-5)

    # ---- bf16 MXU-operand path (v5e/v6e/v7x throughput lever): run + sanity ---
    fwd_bf16 = jax.jit(lambda xx: moe_autoencoder_forward(
        xx, params, k_experts, compute_dtype=jnp.bfloat16))
    out_bf, loss_bf = fwd_bf16(x)
    jax.block_until_ready((out_bf, loss_bf))
    assert bool(jnp.all(jnp.isfinite(out_bf))) and bool(jnp.isfinite(loss_bf))
    assert out_bf.shape == (batch, n_features)

    print("KERNEL_OK")
</pallas_src>

<mosaic_0001>
module attributes {stable_mosaic.version = 11 : i64} {
  func.func @_encode_gate_kernel(%arg0: i32, %arg1: memref<16x128xf32, #tpu.memory_space<vmem>>, %arg2: memref<128x64xf32, #tpu.memory_space<vmem>>, %arg3: memref<1x64xf32, #tpu.memory_space<vmem>>, %arg4: memref<64x4xf32, #tpu.memory_space<vmem>>, %arg5: memref<1x4xf32, #tpu.memory_space<vmem>>, %arg6: memref<16x64xf32, #tpu.memory_space<vmem>>, %arg7: memref<16x4xf32, #tpu.memory_space<vmem>>) attributes {dimension_semantics = [#tpu.dimension_semantics<parallel>], iteration_bounds = array<i64: 1>, scalar_prefetch = 0 : i64, scratch_operands = 0 : i64, tpu.core_type = #tpu.core_type<tc>, window_params = [{transform_indices = @transform_0, window_bounds = array<i64: 16, 128>}, {pipeline_mode = #tpu.pipeline_mode<synchronous>, transform_indices = @transform_1, window_bounds = array<i64: 128, 64>}, {pipeline_mode = #tpu.pipeline_mode<synchronous>, transform_indices = @transform_2, window_bounds = array<i64: 1, 64>}, {pipeline_mode = #tpu.pipeline_mode<synchronous>, transform_indices = @transform_3, window_bounds = array<i64: 64, 4>}, {pipeline_mode = #tpu.pipeline_mode<synchronous>, transform_indices = @transform_4, window_bounds = array<i64: 1, 4>}, {transform_indices = @transform_5, window_bounds = array<i64: 16, 64>}, {transform_indices = @transform_6, window_bounds = array<i64: 16, 4>}]} {
    %c0 = arith.constant 0 : index
    %c0_0 = arith.constant 0 : index
    %0 = vector.load %arg1[%c0, %c0_0] : memref<16x128xf32, #tpu.memory_space<vmem>>, vector<16x128xf32>
    %c0_1 = arith.constant 0 : index
    %c0_2 = arith.constant 0 : index
    %1 = vector.load %arg2[%c0_1, %c0_2] : memref<128x64xf32, #tpu.memory_space<vmem>>, vector<128x64xf32>
    %cst = arith.constant dense<0.000000e+00> : vector<16x64xf32>
    %2 = tpu.matmul %0, %1, %cst {dimension_numbers = #tpu.dot_dimension_numbers<[1], [0], [0], [1], [0, 0, 1, 1], [], []>} : vector<16x128xf32>, vector<128x64xf32>, vector<16x64xf32> -> vector<16x64xf32>
    %c0_3 = arith.constant 0 : index
    %c0_4 = arith.constant 0 : index
    %3 = vector.load %arg3[%c0_3, %c0_4] : memref<1x64xf32, #tpu.memory_space<vmem>>, vector<1x64xf32>
    %4 = vector.broadcast %3 : vector<1x64xf32> to vector<16x64xf32>
    %5 = arith.addf %2, %4 : vector<16x64xf32>
    %c0_5 = arith.constant 0 : index
    %c0_6 = arith.constant 0 : index
    %6 = vector.load %arg6[%c0_5, %c0_6] : memref<16x64xf32, #tpu.memory_space<vmem>>, vector<16x64xf32>
    tpu.vector_store %arg6[%c0_5, %c0_6], %5 {strides = array<i32>} : memref<16x64xf32, #tpu.memory_space<vmem>>, vector<16x64xf32>,
    %c0_7 = arith.constant 0 : index
    %c0_8 = arith.constant 0 : index
    %7 = vector.load %arg4[%c0_7, %c0_8] : memref<64x4xf32, #tpu.memory_space<vmem>>, vector<64x4xf32>
    %cst_9 = arith.constant dense<0.000000e+00> : vector<16x4xf32>
    %8 = tpu.matmul %5, %7, %cst_9 {dimension_numbers = #tpu.dot_dimension_numbers<[1], [0], [0], [1], [0, 0, 1, 1], [], []>} : vector<16x64xf32>, vector<64x4xf32>, vector<16x4xf32> -> vector<16x4xf32>
    %c0_10 = arith.constant 0 : index
    %c0_11 = arith.constant 0 : index
    %9 = vector.load %arg5[%c0_10, %c0_11] : memref<1x4xf32, #tpu.memory_space<vmem>>, vector<1x4xf32>
    %10 = vector.broadcast %9 : vector<1x4xf32> to vector<16x4xf32>
    %11 = arith.addf %8, %10 : vector<16x4xf32>
    %c0_12 = arith.constant 0 : index
    %c0_13 = arith.constant 0 : index
    %12 = vector.load %arg7[%c0_12, %c0_13] : memref<16x4xf32, #tpu.memory_space<vmem>>, vector<16x4xf32>
    tpu.vector_store %arg7[%c0_12, %c0_13], %11 {strides = array<i32>} : memref<16x4xf32, #tpu.memory_space<vmem>>, vector<16x4xf32>,
    return
  }
  func.func @transform_0(%arg0: i32) -> (i32, i32) {
    %c0_i32 = arith.constant 0 : i32
    %c0_i32_0 = arith.constant 0 : i32
    return %arg0, %c0_i32 : i32, i32
  }
  func.func @transform_1(%arg0: i32) -> (i32, i32) {
    %c0_i32 = arith.constant 0 : i32
    %c0_i32_0 = arith.constant 0 : i32
    %c0_i32_1 = arith.constant 0 : i32
    return %c0_i32, %c0_i32_0 : i32, i32
  }
  func.func @transform_2(%arg0: i32) -> (i32, i32) {
    %c0_i32 = arith.constant 0 : i32
    %c0_i32_0 = arith.constant 0 : i32
    %c0_i32_1 = arith.constant 0 : i32
    return %c0_i32, %c0_i32_0 : i32, i32
  }
  func.func @transform_3(%arg0: i32) -> (i32, i32) {
    %c0_i32 = arith.constant 0 : i32
    %c0_i32_0 = arith.constant 0 : i32
    %c0_i32_1 = arith.constant 0 : i32
    return %c0_i32, %c0_i32_0 : i32, i32
  }
  func.func @transform_4(%arg0: i32) -> (i32, i32) {
    %c0_i32 = arith.constant 0 : i32
    %c0_i32_0 = arith.constant 0 : i32
    %c0_i32_1 = arith.constant 0 : i32
    return %c0_i32, %c0_i32_0 : i32, i32
  }
  func.func @transform_5(%arg0: i32) -> (i32, i32) {
    %c0_i32 = arith.constant 0 : i32
    %c0_i32_0 = arith.constant 0 : i32
    return %arg0, %c0_i32 : i32, i32
  }
  func.func @transform_6(%arg0: i32) -> (i32, i32) {
    %c0_i32 = arith.constant 0 : i32
    %c0_i32_0 = arith.constant 0 : i32
    return %arg0, %c0_i32 : i32, i32
  }
}

module attributes {stable_mosaic.version = 11 : i64} {
  func.func @_fused_experts_kernel(%arg0: i32, %arg1: memref<16x64xf32, #tpu.memory_space<vmem>>, %arg2: memref<16x4xf32, #tpu.memory_space<vmem>>, %arg3: memref<64x128xf32, #tpu.memory_space<vmem>>, %arg4: memref<1x128xf32, #tpu.memory_space<vmem>>, %arg5: memref<128x128xf32, #tpu.memory_space<vmem>>, %arg6: memref<128x4xf32, #tpu.memory_space<vmem>>, %arg7: memref<4x128xf32, #tpu.memory_space<vmem>>, %arg8: memref<16x128xf32, #tpu.memory_space<vmem>>) attributes {dimension_semantics = [#tpu.dimension_semantics<parallel>], iteration_bounds = array<i64: 1>, scalar_prefetch = 0 : i64, scratch_operands = 0 : i64, tpu.core_type = #tpu.core_type<tc>, window_params = [{transform_indices = @transform_0, window_bounds = array<i64: 16, 64>}, {transform_indices = @transform_1, window_bounds = array<i64: 16, 4>}, {pipeline_mode = #tpu.pipeline_mode<synchronous>, transform_indices = @transform_2, window_bounds = array<i64: 64, 128>}, {pipeline_mode = #tpu.pipeline_mode<synchronous>, transform_indices = @transform_3, window_bounds = array<i64: 1, 128>}, {pipeline_mode = #tpu.pipeline_mode<synchronous>, transform_indices = @transform_4, window_bounds = array<i64: 128, 128>}, {pipeline_mode = #tpu.pipeline_mode<synchronous>, transform_indices = @transform_5, window_bounds = array<i64: 128, 4>}, {pipeline_mode = #tpu.pipeline_mode<synchronous>, transform_indices = @transform_6, window_bounds = array<i64: 4, 128>}, {transform_indices = @transform_7, window_bounds = array<i64: 16, 128>}]} {
    %c0 = arith.constant 0 : index
    %c0_0 = arith.constant 0 : index
    %0 = vector.load %arg1[%c0, %c0_0] : memref<16x64xf32, #tpu.memory_space<vmem>>, vector<16x64xf32>
    %c0_1 = arith.constant 0 : index
    %c0_2 = arith.constant 0 : index
    %1 = vector.load %arg3[%c0_1, %c0_2] : memref<64x128xf32, #tpu.memory_space<vmem>>, vector<64x128xf32>
    %cst = arith.constant dense<0.000000e+00> : vector<16x128xf32>
    %2 = tpu.matmul %0, %1, %cst {dimension_numbers = #tpu.dot_dimension_numbers<[1], [0], [0], [1], [0, 0, 1, 1], [], []>} : vector<16x64xf32>, vector<64x128xf32>, vector<16x128xf32> -> vector<16x128xf32>
    %c0_3 = arith.constant 0 : index
    %c0_4 = arith.constant 0 : index
    %3 = vector.load %arg4[%c0_3, %c0_4] : memref<1x128xf32, #tpu.memory_space<vmem>>, vector<1x128xf32>
    %4 = vector.broadcast %3 : vector<1x128xf32> to vector<16x128xf32>
    %5 = arith.addf %2, %4 : vector<16x128xf32>
    %cst_5 = arith.constant dense<0xFF800000> : vector<16xf32>
    %6 = vector.multi_reduction <maximumf>, %5, %cst_5 [1] : vector<16x128xf32> to vector<16xf32>
    %7 = vector.shape_cast %6 : vector<16xf32> to vector<16x1xf32>
    %8 = vector.broadcast %7 : vector<16x1xf32> to vector<16x128xf32>
    %9 = arith.subf %5, %8 : vector<16x128xf32>
    %10 = math.exp %9 : vector<16x128xf32>
    %c0_6 = arith.constant 0 : index
    %c0_7 = arith.constant 0 : index
    %11 = vector.load %arg6[%c0_6, %c0_7] : memref<128x4xf32, #tpu.memory_space<vmem>>, vector<128x4xf32>
    %cst_8 = arith.constant dense<0.000000e+00> : vector<16x4xf32>
    %12 = tpu.matmul %10, %11, %cst_8 {dimension_numbers = #tpu.dot_dimension_numbers<[1], [0], [0], [1], [0, 0, 1, 1], [], []>} : vector<16x128xf32>, vector<128x4xf32>, vector<16x4xf32> -> vector<16x4xf32>
    %13 = tpu.reciprocal %12 {approx = true} : vector<16x4xf32> -> vector<16x4xf32>
    %c0_9 = arith.constant 0 : index
    %c0_10 = arith.constant 0 : index
    %14 = vector.load %arg2[%c0_9, %c0_10] : memref<16x4xf32, #tpu.memory_space<vmem>>, vector<16x4xf32>
    %15 = arith.mulf %13, %14 : vector<16x4xf32>
    %c0_11 = arith.constant 0 : index
    %c0_12 = arith.constant 0 : index
    %16 = vector.load %arg7[%c0_11, %c0_12] : memref<4x128xf32, #tpu.memory_space<vmem>>, vector<4x128xf32>
    %cst_13 = arith.constant dense<0.000000e+00> : vector<16x128xf32>
    %17 = tpu.matmul %15, %16, %cst_13 {dimension_numbers = #tpu.dot_dimension_numbers<[1], [0], [0], [1], [0, 0, 1, 1], [], []>} : vector<16x4xf32>, vector<4x128xf32>, vector<16x128xf32> -> vector<16x128xf32>
    %18 = arith.mulf %10, %17 : vector<16x128xf32>
    %19 = arith.mulf %18, %5 : vector<16x128xf32>
    %c0_14 = arith.constant 0 : index
    %c0_15 = arith.constant 0 : index
    %20 = vector.load %arg5[%c0_14, %c0_15] : memref<128x128xf32, #tpu.memory_space<vmem>>, vector<128x128xf32>
    %cst_16 = arith.constant dense<0.000000e+00> : vector<16x128xf32>
    %21 = tpu.matmul %19, %20, %cst_16 {dimension_numbers = #tpu.dot_dimension_numbers<[1], [0], [0], [1], [0, 0, 1, 1], [], []>} : vector<16x128xf32>, vector<128x128xf32>, vector<16x128xf32> -> vector<16x128xf32>
    %c0_17 = arith.constant 0 : index
    %c0_18 = arith.constant 0 : index
    %22 = vector.load %arg8[%c0_17, %c0_18] : memref<16x128xf32, #tpu.memory_space<vmem>>, vector<16x128xf32>
    tpu.vector_store %arg8[%c0_17, %c0_18], %21 {strides = array<i32>} : memref<16x128xf32, #tpu.memory_space<vmem>>, vector<16x128xf32>,
    return
  }
  func.func @transform_0(%arg0: i32) -> (i32, i32) {
    %c0_i32 = arith.constant 0 : i32
    %c0_i32_0 = arith.constant 0 : i32
    return %arg0, %c0_i32 : i32, i32
  }
  func.func @transform_1(%arg0: i32) -> (i32, i32) {
    %c0_i32 = arith.constant 0 : i32
    %c0_i32_0 = arith.constant 0 : i32
    return %arg0, %c0_i32 : i32, i32
  }
  func.func @transform_2(%arg0: i32) -> (i32, i32) {
    %c0_i32 = arith.constant 0 : i32
    %c0_i32_0 = arith.constant 0 : i32
    %c0_i32_1 = arith.constant 0 : i32
    return %c0_i32, %c0_i32_0 : i32, i32
  }
  func.func @transform_3(%arg0: i32) -> (i32, i32) {
    %c0_i32 = arith.constant 0 : i32
    %c0_i32_0 = arith.constant 0 : i32
    %c0_i32_1 = arith.constant 0 : i32
    return %c0_i32, %c0_i32_0 : i32, i32
  }
  func.func @transform_4(%arg0: i32) -> (i32, i32) {
    %c0_i32 = arith.constant 0 : i32
    %c0_i32_0 = arith.constant 0 : i32
    %c0_i32_1 = arith.constant 0 : i32
    return %c0_i32, %c0_i32_0 : i32, i32
  }
  func.func @transform_5(%arg0: i32) -> (i32, i32) {
    %c0_i32 = arith.constant 0 : i32
    %c0_i32_0 = arith.constant 0 : i32
    %c0_i32_1 = arith.constant 0 : i32
    return %c0_i32, %c0_i32_0 : i32, i32
  }
  func.func @transform_6(%arg0: i32) -> (i32, i32) {
    %c0_i32 = arith.constant 0 : i32
    %c0_i32_0 = arith.constant 0 : i32
    %c0_i32_1 = arith.constant 0 : i32
    return %c0_i32, %c0_i32_0 : i32, i32
  }
  func.func @transform_7(%arg0: i32) -> (i32, i32) {
    %c0_i32 = arith.constant 0 : i32
    %c0_i32_0 = arith.constant 0 : i32
    return %arg0, %c0_i32 : i32, i32
  }
}

</mosaic_0001>

<llo_original>
// kernel: _lambda_.2
$region0: #{_lambda_.2}
  #allocation0 [shape = 'u32[]', space=smem, size = 0x4, offset = 0x4, fixed_abs, tag = 'smem constant byte address 0x4 - core index']
  #allocation1 [shape = 'u32[144,128]{1,0:T(1,128)}', space=vmem, size = 0x12000, scoped, tag = 'internal scratch']
  %s0 = inlined_call_operand.hbm [shape: f32[16,128], index: 0, kind: input, shape index: {}]
  %s1 = inlined_call_operand.hbm [shape: f32[128,64], index: 1, kind: input, shape index: {}]
  %s2 = inlined_call_operand.vmem [shape: f32[1,64], index: 2, kind: input, shape index: {}]
  %s3 = inlined_call_operand.vmem [shape: f32[64,4], index: 3, kind: input, shape index: {}]
  %s4 = inlined_call_operand.vmem [shape: f32[1,4], index: 4, kind: input, shape index: {}]
  %s5 = inlined_call_operand.vmem [shape: f32[16,64], index: 5, kind: output, shape index: {0}]
  %s6 = inlined_call_operand.vmem [shape: f32[16,4], index: 6, kind: output, shape index: {1}]
  %7 = xla_tuple %s5, %s6
  %s8 = sld [smem:[#allocation0]]
  $region46: #{_lambda_.2} parent=0
    _
  %s10 = ssub.s32 1, %s8
  %s11 = scalar_select 0, %s10, %s8
  $region1: #{_lambda_.2} parent=0
    #allocation2 [shape = 'u8[8192]{0}', space=vmem, size = 0x2000, scoped, tag = 'input window, operand 0, single buffered']
    #allocation3 [shape = 's32[1]{0}', space=sflag, size = 0x4, scoped, tag = 'scoped memory for _lambda_.2']
    #allocation4 [shape = 'u8[65536]{0}', space=vmem, size = 0x10000, scoped, tag = 'input window, operand 1, single buffered']
    #allocation5 [shape = 's32[1]{0}', space=sflag, size = 0x4, scoped, tag = 'scoped memory for _lambda_.2']
    %12 = vsyncpa [#allocation3], 0
    %13 = vsyncpa [#allocation5], 0
    // Predicated region
    $region2: #{_lambda_.2} parent=1 // pred_check
      _
    $region3: #{_lambda_.2} parent=1 // pred_check_branch
      %15 = sbr.rel (0) target = $region5
    $region4: #{_lambda_.2} parent=1 // pred_region
      %s17 = ssub.s32 256, 256
      %18 = vsyncadd [#allocation3], %s17
      %s19 = sshll.u32 [#allocation2], 4
      %s20 = int_to_ptr.vmem [resolvable:$true] %s19
      %25 = dma.hbm_to_vmem [thread:$0]  %s0, 256, %s20, [#allocation3], 128, 128, 8
    $region5: #{_lambda_.2} parent=1 // pred_fallthru
      _
    // Predicated region
    $region6: #{_lambda_.2} parent=1 // pred_check
      _
    $region7: #{_lambda_.2} parent=1 // pred_check_branch
      %27 = sbr.rel (0) target = $region9
    $region8: #{_lambda_.2} parent=1 // pred_region
      %s29 = ssub.s32 2048, 2048
      %30 = vsyncadd [#allocation5], %s29
      %s31 = sshll.u32 [#allocation4], 4
      %s32 = int_to_ptr.vmem [resolvable:$true] %s31
      %37 = dma.hbm_to_vmem [thread:$0]  %s1, 2048, %s32, [#allocation5], 128, 128, 8
    $region9: #{_lambda_.2} parent=1 // pred_fallthru
      _
    // Predicated region
    $region10: #{_lambda_.2} parent=1 // pred_check
      _
    $region11: #{_lambda_.2} parent=1 // pred_check_branch
      %39 = sbr.rel (0) target = $region13
    $region12: #{_lambda_.2} parent=1 // pred_region
      _
    $region13: #{_lambda_.2} parent=1 // pred_fallthru
      _
    // Predicated region
    $region14: #{_lambda_.2} parent=1 // pred_check
      _
    $region15: #{_lambda_.2} parent=1 // pred_check_branch
      %41 = sbr.rel (0) target = $region17
    $region16: #{_lambda_.2} parent=1 // pred_region
      _
    $region17: #{_lambda_.2} parent=1 // pred_fallthru
      _
    // Predicated region
    $region18: #{_lambda_.2} parent=1 // pred_check
      _
    $region19: #{_lambda_.2} parent=1 // pred_check_branch
      %43 = sbr.rel (0) target = $region21
    $region20: #{_lambda_.2} parent=1 // pred_region
      _
    $region21: #{_lambda_.2} parent=1 // pred_fallthru
      _
    // Predicated region
    $region22: #{_lambda_.2} parent=1 // pred_check
      _
    $region23: #{_lambda_.2} parent=1 // pred_check_branch
      %45 = sbr.rel (0) target = $region25
    $region24: #{_lambda_.2} parent=1 // pred_region
      %46 = dma.done [#allocation3], 256
    $region25: #{_lambda_.2} parent=1 // pred_fallthru
      _
    // Predicated region
    $region26: #{_lambda_.2} parent=1 // pred_check
      _
    $region27: #{_lambda_.2} parent=1 // pred_check_branch
      %48 = sbr.rel (0) target = $region29
    $region28: #{_lambda_.2} parent=1 // pred_region
      %49 = dma.done [#allocation5], 2048
    $region29: #{_lambda_.2} parent=1 // pred_fallthru
      _
    %v50 = vld [vmem:[#allocation2] sm:$0xff]
    %v51 = vld [vmem:[#allocation2 + $0x8] sm:$0xff]
    %v52 = vld [vmem:[#allocation4] sm:$0xff]
    %v53 = vld [vmem:[#allocation4 + $0x8] sm:$0xff]
    %v54 = vld [vmem:[#allocation4 + $0x10] sm:$0xff]
    %v55 = vld [vmem:[#allocation4 + $0x18] sm:$0xff]
    %v56 = vld [vmem:[#allocation4 + $0x20] sm:$0xff]
    %v57 = vld [vmem:[#allocation4 + $0x28] sm:$0xff]
    %v58 = vld [vmem:[#allocation4 + $0x30] sm:$0xff]
    %v59 = vld [vmem:[#allocation4 + $0x38] sm:$0xff]
    %v60 = vld [vmem:[#allocation4 + $0x40] sm:$0xff]
    %v61 = vld [vmem:[#allocation4 + $0x48] sm:$0xff]
    %v62 = vld [vmem:[#allocation4 + $0x50] sm:$0xff]
    %v63 = vld [vmem:[#allocation4 + $0x58] sm:$0xff]
    %v64 = vld [vmem:[#allocation4 + $0x60] sm:$0xff]
    %v65 = vld [vmem:[#allocation4 + $0x68] sm:$0xff]
    %v66 = vld [vmem:[#allocation4 + $0x70] sm:$0xff]
    %v67 = vld [vmem:[#allocation4 + $0x78] sm:$0xff]
    %v68 = vld [vmem:[%s2] sm:$0x1]
    %v70 = vlaneseq
    %v71 = vshrl.u32 %v70, 7
    %v72 = vsub.s32 0, %v71
    %v73 = vrot.slane %v68, %v72
    %75 = vmatprep.subr.mxu0 0.0
    %76 = vmatpush1.msra.mxu0 %v67
    %77 = vmatprep.subr.mxu0 0.0
    %78 = vmatpush1.msra.mxu0 %v66
    %79 = vmatprep.subr.mxu0 0.0
    %80 = vmatpush1.msra.mxu0 %v65
    %81 = vmatprep.subr.mxu0 0.0
    %82 = vmatpush1.msra.mxu0 %v64
    %83 = vmatprep.subr.mxu0 0.0
    %84 = vmatpush1.msra.mxu0 %v63
    %85 = vmatprep.subr.mxu0 0.0
    %86 = vmatpush1.msra.mxu0 %v62
    %87 = vmatprep.subr.mxu0 0.0
    %88 = vmatpush1.msra.mxu0 %v61
    %89 = vmatprep.subr.mxu0 0.0
    %90 = vmatpush1.msra.mxu0 %v60
    %91 = vmatprep.subr.mxu0 0.0
    %92 = vmatpush1.msra.mxu0 %v59
    %93 = vmatprep.subr.mxu0 0.0
    %94 = vmatpush1.msra.mxu0 %v58
    %95 = vmatprep.subr.mxu0 0.0
    %96 = vmatpush1.msra.mxu0 %v57
    %97 = vmatprep.subr.mxu0 0.0
    %98 = vmatpush1.msra.mxu0 %v56
    %99 = vmatprep.subr.mxu0 0.0
    %100 = vmatpush1.msra.mxu0 %v55
    %101 = vmatprep.subr.mxu0 0.0
    %102 = vmatpush1.msra.mxu0 %v54
    %103 = vmatprep.subr.mxu0 0.0
    %104 = vmatpush1.msra.mxu0 %v53
    %105 = vmatprep.subr.mxu0 0.0
    %106 = vmatpush1.msra.mxu0 %v52
    %107 = vmatprep.subr.mxu0 0.0
    %108 = vmatpush2.msra.mxu0 0.0
    %109 = vmatprep.subr.mxu0 0.0
    %110 = vmatpush2.msra.mxu0 0.0
    %111 = vmatprep.subr.mxu0 0.0
    %112 = vmatpush2.msra.mxu0 0.0
    %113 = vmatprep.subr.mxu0 0.0
    %114 = vmatpush2.msra.mxu0 0.0
    %115 = vmatprep.subr.mxu0 0.0
    %116 = vmatpush2.msra.mxu0 0.0
    %117 = vmatprep.subr.mxu0 0.0
    %118 = vmatpush2.msra.mxu0 0.0
    %119 = vmatprep.subr.mxu0 0.0
    %120 = vmatpush2.msra.mxu0 0.0
    %121 = vmatprep.subr.mxu0 0.0
    %122 = vmatpush2.msra.mxu0 0.0
    %123 = vmatprep.subr.mxu0 0.0
    %124 = vmatpush2.msra.mxu0 0.0
    %125 = vmatprep.subr.mxu0 0.0
    %126 = vmatpush2.msra.mxu0 0.0
    %127 = vmatprep.subr.mxu0 0.0
    %128 = vmatpush2.msra.mxu0 0.0
    %129 = vmatprep.subr.mxu0 0.0
    %130 = vmatpush2.msra.mxu0 0.0
    %131 = vmatprep.subr.mxu0 0.0
    %132 = vmatpush2.msra.mxu0 0.0
    %133 = vmatprep.subr.mxu0 0.0
    %134 = vmatpush2.msra.mxu0 0.0
    %135 = vmatprep.subr.mxu0 0.0
    %136 = vmatpush2.msra.mxu0 0.0
    %137 = vmatprep.subr.mxu0 0.0
    %138 = vmatpush2.msra.mxu0 0.0
    %139 = vmatprep.mubr.f32.mxu0 0.0
    %140 = vmatmul.mubr.f32.gmra.mxu0 %v50
    %v141 = vpop.f32.mrf.mxu0
    %v142 = vadd.f32 %v73, %v141
    %v143 = vpop.f32.mrf.mxu0
    %144 = vmatprep.mubr.f32.mxu0 0.0
    %145 = vmatmul.mubr.f32.gmra.mxu0 %v51
    %v146 = vpop.f32.mrf.mxu0
    %v147 = vadd.f32 %v73, %v146
    %v148 = vpop.f32.mrf.mxu0
    %149 = vdwg.mxu0
    %vm150 = vcmask 523264
    %151 = vst.msk [vmem:[%s5] sm:$0xff] %vm150, %v142
    %152 = vst.msk [vmem:[%s5 + $0x8] sm:$0xff] %vm150, %v147
    %v153 = vld [vmem:[%s3] sm:$0xff]
    %v154 = vld [vmem:[%s3 + $0x8] sm:$0xff]
    %v155 = vld [vmem:[%s3 + $0x10] sm:$0xff]
    %v156 = vld [vmem:[%s3 + $0x18] sm:$0xff]
    %v157 = vld [vmem:[%s3 + $0x20] sm:$0xff]
    %v158 = vld [vmem:[%s3 + $0x28] sm:$0xff]
    %v159 = vld [vmem:[%s3 + $0x30] sm:$0xff]
    %v160 = vld [vmem:[%s3 + $0x38] sm:$0xff]
    %v161 = vld [vmem:[%s4] sm:$0x1]
    %v163 = vlaneseq
    %v164 = vshrl.u32 %v163, 7
    %v165 = vsub.s32 0, %v164
    %v166 = vrot.slane %v161, %v165
    %v169 = vsel %vm150, %v142, 0
    %v172 = vsel %vm150, %v147, 0
    %174 = vmatprep.subr.mxu0 0.0
    %175 = vmatpush1.msra.mxu0 0.0
    %176 = vmatprep.subr.mxu0 0.0
    %177 = vmatpush1.msra.mxu0 0.0
    %178 = vmatprep.subr.mxu0 0.0
    %179 = vmatpush1.msra.mxu0 0.0
    %180 = vmatprep.subr.mxu0 0.0
    %181 = vmatpush1.msra.mxu0 0.0
    %182 = vmatprep.subr.mxu0 0.0
    %183 = vmatpush1.msra.mxu0 0.0
    %184 = vmatprep.subr.mxu0 0.0
    %185 = vmatpush1.msra.mxu0 0.0
    %186 = vmatprep.subr.mxu0 0.0
    %187 = vmatpush1.msra.mxu0 0.0
    %188 = vmatprep.subr.mxu0 0.0
    %189 = vmatpush1.msra.mxu0 0.0
    %190 = vmatprep.subr.mxu0 0.0
    %191 = vmatpush1.msra.mxu0 %v160
    %192 = vmatprep.subr.mxu0 0.0
    %193 = vmatpush1.msra.mxu0 %v159
    %194 = vmatprep.subr.mxu0 0.0
    %195 = vmatpush1.msra.mxu0 %v158
    %196 = vmatprep.subr.mxu0 0.0
    %197 = vmatpush1.msra.mxu0 %v157
    %198 = vmatprep.subr.mxu0 0.0
    %199 = vmatpush1.msra.mxu0 %v156
    %200 = vmatprep.subr.mxu0 0.0
    %201 = vmatpush1.msra.mxu0 %v155
    %202 = vmatprep.subr.mxu0 0.0
    %203 = vmatpush1.msra.mxu0 %v154
    %204 = vmatprep.subr.mxu0 0.0
    %205 = vmatpush1.msra.mxu0 %v153
    %206 = vmatprep.subr.mxu0 0.0
    %207 = vmatpush2.msra.mxu0 0.0
    %208 = vmatprep.subr.mxu0 0.0
    %209 = vmatpush2.msra.mxu0 0.0
    %210 = vmatprep.subr.mxu0 0.0
    %211 = vmatpush2.msra.mxu0 0.0
    %212 = vmatprep.subr.mxu0 0.0
    %213 = vmatpush2.msra.mxu0 0.0
    %214 = vmatprep.subr.mxu0 0.0
    %215 = vmatpush2.msra.mxu0 0.0
    %216 = vmatprep.subr.mxu0 0.0
    %217 = vmatpush2.msra.mxu0 0.0
    %218 = vmatprep.subr.mxu0 0.0
    %219 = vmatpush2.msra.mxu0 0.0
    %220 = vmatprep.subr.mxu0 0.0
    %221 = vmatpush2.msra.mxu0 0.0
    %222 = vmatprep.subr.mxu0 0.0
    %223 = vmatpush2.msra.mxu0 0.0
    %224 = vmatprep.subr.mxu0 0.0
    %225 = vmatpush2.msra.mxu0 0.0
    %226 = vmatprep.subr.mxu0 0.0
    %227 = vmatpush2.msra.mxu0 0.0
    %228 = vmatprep.subr.mxu0 0.0
    %229 = vmatpush2.msra.mxu0 0.0
    %230 = vmatprep.subr.mxu0 0.0
    %231 = vmatpush2.msra.mxu0 0.0
    %232 = vmatprep.subr.mxu0 0.0
    %233 = vmatpush2.msra.mxu0 0.0
    %234 = vmatprep.subr.mxu0 0.0
    %235 = vmatpush2.msra.mxu0 0.0
    %236 = vmatprep.subr.mxu0 0.0
    %237 = vmatpush2.msra.mxu0 0.0
    %238 = vmatprep.mubr.f32.mxu0 0.0
    %239 = vmatmul.mubr.f32.gmra.mxu0 %v169
    %v240 = vpop.f32.mrf.mxu0
    %v241 = vadd.f32 %v166, %v240
    %v242 = vpop.f32.mrf.mxu0
    %243 = vmatprep.mubr.f32.mxu0 0.0
    %244 = vmatmul.mubr.f32.gmra.mxu0 %v172
    %v245 = vpop.f32.mrf.mxu0
    %v246 = vadd.f32 %v166, %v245
    %v247 = vpop.f32.mrf.mxu0
    %248 = vdwg.mxu0
    %vm249 = vcmask 31744
    %250 = vst.msk [vmem:[%s6] sm:$0xff] %vm249, %v241
    %251 = vst.msk [vmem:[%s6 + $0x8] sm:$0xff] %vm249, %v246
    // Predicated region
    $region30: #{_lambda_.2} parent=1 // pred_check
      _
    $region31: #{_lambda_.2} parent=1 // pred_check_branch
      %253 = sbr.rel (0) target = $region33
    $region32: #{_lambda_.2} parent=1 // pred_region
      _
    $region33: #{_lambda_.2} parent=1 // pred_fallthru
      _
    // Predicated region
    $region34: #{_lambda_.2} parent=1 // pred_check
      _
    $region35: #{_lambda_.2} parent=1 // pred_check_branch
      %255 = sbr.rel (0) target = $region37
    $region36: #{_lambda_.2} parent=1 // pred_region
      _
    $region37: #{_lambda_.2} parent=1 // pred_fallthru
      _
    // Predicated region
    $region38: #{_lambda_.2} parent=1 // pred_check
      _
    $region39: #{_lambda_.2} parent=1 // pred_check_branch
      %257 = sbr.rel (0) target = $region41
    $region40: #{_lambda_.2} parent=1 // pred_region
      _
    $region41: #{_lambda_.2} parent=1 // pred_fallthru
      _
    // Predicated region
    $region42: #{_lambda_.2} parent=1 // pred_check
      _
    $region43: #{_lambda_.2} parent=1 // pred_check_branch
      %259 = sbr.rel (0) target = $region45
    $region44: #{_lambda_.2} parent=1 // pred_region
      _
    $region45: #{_lambda_.2} parent=1 // pred_fallthru
      _
    %260 = vsyncpa [#allocation3], 1
    %261 = vsyncpa [#allocation5], 1

// kernel: _lambda_.3
$region0: #{_lambda_.3}
  #allocation0 [shape = 'u32[]', space=smem, size = 0x4, offset = 0x4, fixed_abs, tag = 'smem constant byte address 0x4 - core index']
  #allocation1 [shape = 'u32[144,128]{1,0:T(1,128)}', space=vmem, size = 0x12000, scoped, tag = 'internal scratch']
  %s0 = inlined_call_operand.vmem [shape: f32[16,64], index: 0, kind: input, shape index: {}]
  %s1 = inlined_call_operand.vmem [shape: f32[16,4], index: 1, kind: input, shape index: {}]
  %s2 = inlined_call_operand.vmem [shape: f32[64,128], index: 2, kind: input, shape index: {}]
  %s3 = inlined_call_operand.vmem [shape: f32[1,128], index: 3, kind: input, shape index: {}]
  %s4 = inlined_call_operand.vmem [shape: f32[128,128], index: 4, kind: input, shape index: {}]
  %s5 = inlined_call_operand.vmem [shape: f32[128,4], index: 5, kind: input, shape index: {}]
  %s6 = inlined_call_operand.vmem [shape: f32[4,128], index: 6, kind: input, shape index: {}]
  %s7 = inlined_call_operand.hbm [shape: f32[16,128], index: 7, kind: output, shape index: {}]
  %s8 = sld [smem:[#allocation0]]
  $region38: #{_lambda_.3} parent=0
    _
  %s10 = ssub.s32 1, %s8
  %s11 = scalar_select 0, %s10, %s8
  $region1: #{_lambda_.3} parent=0
    #allocation2 [shape = 'u8[8192]{0}', space=vmem, size = 0x2000, scoped, tag = 'output window, operand 0, single buffered']
    #allocation3 [shape = 's32[1]{0}', space=sflag, size = 0x4, scoped, tag = 'scoped memory for _lambda_.3']
    %12 = vsyncpa [#allocation3], 0
    // Predicated region
    $region2: #{_lambda_.3} parent=1 // pred_check
      _
    $region3: #{_lambda_.3} parent=1 // pred_check_branch
      %14 = sbr.rel (0) target = $region5
    $region4: #{_lambda_.3} parent=1 // pred_region
      _
    $region5: #{_lambda_.3} parent=1 // pred_fallthru
      _
    // Predicated region
    $region6: #{_lambda_.3} parent=1 // pred_check
      _
    $region7: #{_lambda_.3} parent=1 // pred_check_branch
      %16 = sbr.rel (0) target = $region9
    $region8: #{_lambda_.3} parent=1 // pred_region
      _
    $region9: #{_lambda_.3} parent=1 // pred_fallthru
      _
    // Predicated region
    $region10: #{_lambda_.3} parent=1 // pred_check
      _
    $region11: #{_lambda_.3} parent=1 // pred_check_branch
      %18 = sbr.rel (0) target = $region13
    $region12: #{_lambda_.3} parent=1 // pred_region
      _
    $region13: #{_lambda_.3} parent=1 // pred_fallthru
      _
    // Predicated region
    $region14: #{_lambda_.3} parent=1 // pred_check
      _
    $region15: #{_lambda_.3} parent=1 // pred_check_branch
      %20 = sbr.rel (0) target = $region17
    $region16: #{_lambda_.3} parent=1 // pred_region
      _
    $region17: #{_lambda_.3} parent=1 // pred_fallthru
      _
    // Predicated region
    $region18: #{_lambda_.3} parent=1 // pred_check
      _
    $region19: #{_lambda_.3} parent=1 // pred_check_branch
      %22 = sbr.rel (0) target = $region21
    $region20: #{_lambda_.3} parent=1 // pred_region
      _
    $region21: #{_lambda_.3} parent=1 // pred_fallthru
      _
    // Predicated region
    $region22: #{_lambda_.3} parent=1 // pred_check
      _
    $region23: #{_lambda_.3} parent=1 // pred_check_branch
      %24 = sbr.rel (0) target = $region25
    $region24: #{_lambda_.3} parent=1 // pred_region
      _
    $region25: #{_lambda_.3} parent=1 // pred_fallthru
      _
    // Predicated region
    $region26: #{_lambda_.3} parent=1 // pred_check
      _
    $region27: #{_lambda_.3} parent=1 // pred_check_branch
      %26 = sbr.rel (0) target = $region29
    $region28: #{_lambda_.3} parent=1 // pred_region
      _
    $region29: #{_lambda_.3} parent=1 // pred_fallthru
      _
    %v27 = vld [vmem:[%s0] sm:$0xff]
    %v28 = vld [vmem:[%s0 + $0x8] sm:$0xff]
    %v29 = vld [vmem:[%s2] sm:$0xff]
    %v30 = vld [vmem:[%s2 + $0x8] sm:$0xff]
    %v31 = vld [vmem:[%s2 + $0x10] sm:$0xff]
    %v32 = vld [vmem:[%s2 + $0x18] sm:$0xff]
    %v33 = vld [vmem:[%s2 + $0x20] sm:$0xff]
    %v34 = vld [vmem:[%s2 + $0x28] sm:$0xff]
    %v35 = vld [vmem:[%s2 + $0x30] sm:$0xff]
    %v36 = vld [vmem:[%s2 + $0x38] sm:$0xff]
    %v37 = vld [vmem:[%s3] sm:$0x1]
    %v39 = vlaneseq
    %v40 = vshrl.u32 %v39, 7
    %v41 = vsub.s32 0, %v40
    %v42 = vrot.slane %v37, %v41
    %vm44 = vcmask 523264
    %v46 = vsel %vm44, %v27, 0
    %v49 = vsel %vm44, %v28, 0
    %51 = vmatprep.subr.mxu0 0.0
    %52 = vmatpush1.msra.mxu0 0.0
    %53 = vmatprep.subr.mxu0 0.0
    %54 = vmatpush1.msra.mxu0 0.0
    %55 = vmatprep.subr.mxu0 0.0
    %56 = vmatpush1.msra.mxu0 0.0
    %57 = vmatprep.subr.mxu0 0.0
    %58 = vmatpush1.msra.mxu0 0.0
    %59 = vmatprep.subr.mxu0 0.0
    %60 = vmatpush1.msra.mxu0 0.0
    %61 = vmatprep.subr.mxu0 0.0
    %62 = vmatpush1.msra.mxu0 0.0
    %63 = vmatprep.subr.mxu0 0.0
    %64 = vmatpush1.msra.mxu0 0.0
    %65 = vmatprep.subr.mxu0 0.0
    %66 = vmatpush1.msra.mxu0 0.0
    %67 = vmatprep.subr.mxu0 0.0
    %68 = vmatpush1.msra.mxu0 %v36
    %69 = vmatprep.subr.mxu0 0.0
    %70 = vmatpush1.msra.mxu0 %v35
    %71 = vmatprep.subr.mxu0 0.0
    %72 = vmatpush1.msra.mxu0 %v34
    %73 = vmatprep.subr.mxu0 0.0
    %74 = vmatpush1.msra.mxu0 %v33
    %75 = vmatprep.subr.mxu0 0.0
    %76 = vmatpush1.msra.mxu0 %v32
    %77 = vmatprep.subr.mxu0 0.0
    %78 = vmatpush1.msra.mxu0 %v31
    %79 = vmatprep.subr.mxu0 0.0
    %80 = vmatpush1.msra.mxu0 %v30
    %81 = vmatprep.subr.mxu0 0.0
    %82 = vmatpush1.msra.mxu0 %v29
    %83 = vmatprep.subr.mxu0 0.0
    %84 = vmatpush2.msra.mxu0 0.0
    %85 = vmatprep.subr.mxu0 0.0
    %86 = vmatpush2.msra.mxu0 0.0
    %87 = vmatprep.subr.mxu0 0.0
    %88 = vmatpush2.msra.mxu0 0.0
    %89 = vmatprep.subr.mxu0 0.0
    %90 = vmatpush2.msra.mxu0 0.0
    %91 = vmatprep.subr.mxu0 0.0
    %92 = vmatpush2.msra.mxu0 0.0
    %93 = vmatprep.subr.mxu0 0.0
    %94 = vmatpush2.msra.mxu0 0.0
    %95 = vmatprep.subr.mxu0 0.0
    %96 = vmatpush2.msra.mxu0 0.0
    %97 = vmatprep.subr.mxu0 0.0
    %98 = vmatpush2.msra.mxu0 0.0
    %99 = vmatprep.subr.mxu0 0.0
    %100 = vmatpush2.msra.mxu0 0.0
    %101 = vmatprep.subr.mxu0 0.0
    %102 = vmatpush2.msra.mxu0 0.0
    %103 = vmatprep.subr.mxu0 0.0
    %104 = vmatpush2.msra.mxu0 0.0
    %105 = vmatprep.subr.mxu0 0.0
    %106 = vmatpush2.msra.mxu0 0.0
    %107 = vmatprep.subr.mxu0 0.0
    %108 = vmatpush2.msra.mxu0 0.0
    %109 = vmatprep.subr.mxu0 0.0
    %110 = vmatpush2.msra.mxu0 0.0
    %111 = vmatprep.subr.mxu0 0.0
    %112 = vmatpush2.msra.mxu0 0.0
    %113 = vmatprep.subr.mxu0 0.0
    %114 = vmatpush2.msra.mxu0 0.0
    %115 = vmatprep.mubr.f32.mxu0 0.0
    %116 = vmatmul.mubr.f32.gmra.mxu0 %v46
    %v117 = vpop.f32.mrf.mxu0
    %v118 = vadd.f32 %v42, %v117
    %v119 = vpop.f32.mrf.mxu0
    %120 = vmatprep.mubr.f32.mxu0 0.0
    %121 = vmatmul.mubr.f32.gmra.mxu0 %v49
    %v122 = vpop.f32.mrf.mxu0
    %v123 = vadd.f32 %v42, %v122
    %v124 = vpop.f32.mrf.mxu0
    %125 = vdwg.mxu0
    %126 = vmax.xlane.f32.xlu0 %v118
    %v127 = vpop.xlane.xlu0 %126
    %128 = vmax.xlane.f32.xlu0 %v123
    %v129 = vpop.xlane.xlu0 %128
    %v130 = vsub.f32 %v118, %v127
    %v131 = vsub.f32 %v123, %v129
    %v132 = vmul.f32 %v130, 1.442695
    %v133 = vpow.pop %v132
    %v134 = vmul.f32 %v131, 1.442695
    %v135 = vpow.pop %v134
    %v136 = vld [vmem:[%s5] sm:$0xff]
    %v137 = vld [vmem:[%s5 + $0x8] sm:$0xff]
    %v138 = vld [vmem:[%s5 + $0x10] sm:$0xff]
    %v139 = vld [vmem:[%s5 + $0x18] sm:$0xff]
    %v140 = vld [vmem:[%s5 + $0x20] sm:$0xff]
    %v141 = vld [vmem:[%s5 + $0x28] sm:$0xff]
    %v142 = vld [vmem:[%s5 + $0x30] sm:$0xff]
    %v143 = vld [vmem:[%s5 + $0x38] sm:$0xff]
    %v144 = vld [vmem:[%s5 + $0x40] sm:$0xff]
    %v145 = vld [vmem:[%s5 + $0x48] sm:$0xff]
    %v146 = vld [vmem:[%s5 + $0x50] sm:$0xff]
    %v147 = vld [vmem:[%s5 + $0x58] sm:$0xff]
    %v148 = vld [vmem:[%s5 + $0x60] sm:$0xff]
    %v149 = vld [vmem:[%s5 + $0x68] sm:$0xff]
    %v150 = vld [vmem:[%s5 + $0x70] sm:$0xff]
    %v151 = vld [vmem:[%s5 + $0x78] sm:$0xff]
    %152 = vmatprep.subr.mxu0 0.0
    %153 = vmatpush1.msra.mxu0 %v151
    %154 = vmatprep.subr.mxu0 0.0
    %155 = vmatpush1.msra.mxu0 %v150
    %156 = vmatprep.subr.mxu0 0.0
    %157 = vmatpush1.msra.mxu0 %v149
    %158 = vmatprep.subr.mxu0 0.0
    %159 = vmatpush1.msra.mxu0 %v148
    %160 = vmatprep.subr.mxu0 0.0
    %161 = vmatpush1.msra.mxu0 %v147
    %162 = vmatprep.subr.mxu0 0.0
    %163 = vmatpush1.msra.mxu0 %v146
    %164 = vmatprep.subr.mxu0 0.0
    %165 = vmatpush1.msra.mxu0 %v145
    %166 = vmatprep.subr.mxu0 0.0
    %167 = vmatpush1.msra.mxu0 %v144
    %168 = vmatprep.subr.mxu0 0.0
    %169 = vmatpush1.msra.mxu0 %v143
    %170 = vmatprep.subr.mxu0 0.0
    %171 = vmatpush1.msra.mxu0 %v142
    %172 = vmatprep.subr.mxu0 0.0
    %173 = vmatpush1.msra.mxu0 %v141
    %174 = vmatprep.subr.mxu0 0.0
    %175 = vmatpush1.msra.mxu0 %v140
    %176 = vmatprep.subr.mxu0 0.0
    %177 = vmatpush1.msra.mxu0 %v139
    %178 = vmatprep.subr.mxu0 0.0
    %179 = vmatpush1.msra.mxu0 %v138
    %180 = vmatprep.subr.mxu0 0.0
    %181 = vmatpush1.msra.mxu0 %v137
    %182 = vmatprep.subr.mxu0 0.0
    %183 = vmatpush1.msra.mxu0 %v136
    %184 = vmatprep.subr.mxu0 0.0
    %185 = vmatpush2.msra.mxu0 0.0
    %186 = vmatprep.subr.mxu0 0.0
    %187 = vmatpush2.msra.mxu0 0.0
    %188 = vmatprep.subr.mxu0 0.0
    %189 = vmatpush2.msra.mxu0 0.0
    %190 = vmatprep.subr.mxu0 0.0
    %191 = vmatpush2.msra.mxu0 0.0
    %192 = vmatprep.subr.mxu0 0.0
    %193 = vmatpush2.msra.mxu0 0.0
    %194 = vmatprep.subr.mxu0 0.0
    %195 = vmatpush2.msra.mxu0 0.0
    %196 = vmatprep.subr.mxu0 0.0
    %197 = vmatpush2.msra.mxu0 0.0
    %198 = vmatprep.subr.mxu0 0.0
    %199 = vmatpush2.msra.mxu0 0.0
    %200 = vmatprep.subr.mxu0 0.0
    %201 = vmatpush2.msra.mxu0 0.0
    %202 = vmatprep.subr.mxu0 0.0
    %203 = vmatpush2.msra.mxu0 0.0
    %204 = vmatprep.subr.mxu0 0.0
    %205 = vmatpush2.msra.mxu0 0.0
    %206 = vmatprep.subr.mxu0 0.0
    %207 = vmatpush2.msra.mxu0 0.0
    %208 = vmatprep.subr.mxu0 0.0
    %209 = vmatpush2.msra.mxu0 0.0
    %210 = vmatprep.subr.mxu0 0.0
    %211 = vmatpush2.msra.mxu0 0.0
    %212 = vmatprep.subr.mxu0 0.0
    %213 = vmatpush2.msra.mxu0 0.0
    %214 = vmatprep.subr.mxu0 0.0
    %215 = vmatpush2.msra.mxu0 0.0
    %216 = vmatprep.mubr.f32.mxu0 0.0
    %217 = vmatmul.mubr.f32.gmra.mxu0 %v133
    %v218 = vpop.f32.mrf.mxu0
    %v219 = vadd.f32 0.0, %v218
    %v220 = vpop.f32.mrf.mxu0
    %221 = vmatprep.mubr.f32.mxu0 0.0
    %222 = vmatmul.mubr.f32.gmra.mxu0 %v135
    %v223 = vpop.f32.mrf.mxu0
    %v224 = vadd.f32 0.0, %v223
    %v225 = vpop.f32.mrf.mxu0
    %226 = vdwg.mxu0
    %v227 = vrcp.pop %v219
    %v228 = vrcp.pop %v224
    %v229 = vld [vmem:[%s1] sm:$0xff]
    %v230 = vld [vmem:[%s1 + $0x8] sm:$0xff]
    %v231 = vmul.f32 %v227, %v229
    %v232 = vmul.f32 %v228, %v230
    %v233 = vld [vmem:[%s6] sm:$0xf]
    %vm234 = vcmask 31744
    %v236 = vsel %vm234, %v231, 0
    %v239 = vsel %vm234, %v232, 0
    %vm241 = vcmask 1043456
    %v243 = vsel %vm241, %v233, 0
    %245 = vmatprep.subr.mxu0 0.0
    %246 = vmatpush1.msra.mxu0 0.0
    %247 = vmatprep.subr.mxu0 0.0
    %248 = vmatpush1.msra.mxu0 0.0
    %249 = vmatprep.subr.mxu0 0.0
    %250 = vmatpush1.msra.mxu0 0.0
    %251 = vmatprep.subr.mxu0 0.0
    %252 = vmatpush1.msra.mxu0 0.0
    %253 = vmatprep.subr.mxu0 0.0
    %254 = vmatpush1.msra.mxu0 0.0
    %255 = vmatprep.subr.mxu0 0.0
    %256 = vmatpush1.msra.mxu0 0.0
    %257 = vmatprep.subr.mxu0 0.0
    %258 = vmatpush1.msra.mxu0 0.0
    %259 = vmatprep.subr.mxu0 0.0
    %260 = vmatpush1.msra.mxu0 0.0
    %261 = vmatprep.subr.mxu0 0.0
    %262 = vmatpush1.msra.mxu0 0.0
    %263 = vmatprep.subr.mxu0 0.0
    %264 = vmatpush1.msra.mxu0 0.0
    %265 = vmatprep.subr.mxu0 0.0
    %266 = vmatpush1.msra.mxu0 0.0
    %267 = vmatprep.subr.mxu0 0.0
    %268 = vmatpush1.msra.mxu0 0.0
    %269 = vmatprep.subr.mxu0 0.0
    %270 = vmatpush1.msra.mxu0 0.0
    %271 = vmatprep.subr.mxu0 0.0
    %272 = vmatpush1.msra.mxu0 0.0
    %273 = vmatprep.subr.mxu0 0.0
    %274 = vmatpush1.msra.mxu0 0.0
    %275 = vmatprep.subr.mxu0 0.0
    %276 = vmatpush1.msra.mxu0 %v243
    %277 = vmatprep.subr.mxu0 0.0
    %278 = vmatpush2.msra.mxu0 0.0
    %279 = vmatprep.subr.mxu0 0.0
    %280 = vmatpush2.msra.mxu0 0.0
    %281 = vmatprep.subr.mxu0 0.0
    %282 = vmatpush2.msra.mxu0 0.0
    %283 = vmatprep.subr.mxu0 0.0
    %284 = vmatpush2.msra.mxu0 0.0
    %285 = vmatprep.subr.mxu0 0.0
    %286 = vmatpush2.msra.mxu0 0.0
    %287 = vmatprep.subr.mxu0 0.0
    %288 = vmatpush2.msra.mxu0 0.0
    %289 = vmatprep.subr.mxu0 0.0
    %290 = vmatpush2.msra.mxu0 0.0
    %291 = vmatprep.subr.mxu0 0.0
    %292 = vmatpush2.msra.mxu0 0.0
    %293 = vmatprep.subr.mxu0 0.0
    %294 = vmatpush2.msra.mxu0 0.0
    %295 = vmatprep.subr.mxu0 0.0
    %296 = vmatpush2.msra.mxu0 0.0
    %297 = vmatprep.subr.mxu0 0.0
    %298 = vmatpush2.msra.mxu0 0.0
    %299 = vmatprep.subr.mxu0 0.0
    %300 = vmatpush2.msra.mxu0 0.0
    %301 = vmatprep.subr.mxu0 0.0
    %302 = vmatpush2.msra.mxu0 0.0
    %303 = vmatprep.subr.mxu0 0.0
    %304 = vmatpush2.msra.mxu0 0.0
    %305 = vmatprep.subr.mxu0 0.0
    %306 = vmatpush2.msra.mxu0 0.0
    %307 = vmatprep.subr.mxu0 0.0
    %308 = vmatpush2.msra.mxu0 0.0
    %309 = vmatprep.mubr.f32.mxu0 0.0
    %310 = vmatmul.mubr.f32.gmra.mxu0 %v236
    %v311 = vpop.f32.mrf.mxu0
    %v312 = vadd.f32 0.0, %v311
    %v313 = vpop.f32.mrf.mxu0
    %314 = vmatprep.mubr.f32.mxu0 0.0
    %315 = vmatmul.mubr.f32.gmra.mxu0 %v239
    %v316 = vpop.f32.mrf.mxu0
    %v317 = vadd.f32 0.0, %v316
    %v318 = vpop.f32.mrf.mxu0
    %319 = vdwg.mxu0
    %v320 = vmul.f32 %v133, %v312
    %v321 = vmul.f32 %v135, %v317
    %v322 = vmul.f32 %v320, %v118
    %v323 = vmul.f32 %v321, %v123
    %v324 = vld [vmem:[%s4] sm:$0xff]
    %v325 = vld [vmem:[%s4 + $0x8] sm:$0xff]
    %v326 = vld [vmem:[%s4 + $0x10] sm:$0xff]
    %v327 = vld [vmem:[%s4 + $0x18] sm:$0xff]
    %v328 = vld [vmem:[%s4 + $0x20] sm:$0xff]
    %v329 = vld [vmem:[%s4 + $0x28] sm:$0xff]
    %v330 = vld [vmem:[%s4 + $0x30] sm:$0xff]
    %v331 = vld [vmem:[%s4 + $0x38] sm:$0xff]
    %v332 = vld [vmem:[%s4 + $0x40] sm:$0xff]
    %v333 = vld [vmem:[%s4 + $0x48] sm:$0xff]
    %v334 = vld [vmem:[%s4 + $0x50] sm:$0xff]
    %v335 = vld [vmem:[%s4 + $0x58] sm:$0xff]
    %v336 = vld [vmem:[%s4 + $0x60] sm:$0xff]
    %v337 = vld [vmem:[%s4 + $0x68] sm:$0xff]
    %v338 = vld [vmem:[%s4 + $0x70] sm:$0xff]
    %v339 = vld [vmem:[%s4 + $0x78] sm:$0xff]
    %340 = vmatprep.subr.mxu0 0.0
    %341 = vmatpush1.msra.mxu0 %v339
    %342 = vmatprep.subr.mxu0 0.0
    %343 = vmatpush1.msra.mxu0 %v338
    %344 = vmatprep.subr.mxu0 0.0
    %345 = vmatpush1.msra.mxu0 %v337
    %346 = vmatprep.subr.mxu0 0.0
    %347 = vmatpush1.msra.mxu0 %v336
    %348 = vmatprep.subr.mxu0 0.0
    %349 = vmatpush1.msra.mxu0 %v335
    %350 = vmatprep.subr.mxu0 0.0
    %351 = vmatpush1.msra.mxu0 %v334
    %352 = vmatprep.subr.mxu0 0.0
    %353 = vmatpush1.msra.mxu0 %v333
    %354 = vmatprep.subr.mxu0 0.0
    %355 = vmatpush1.msra.mxu0 %v332
    %356 = vmatprep.subr.mxu0 0.0
    %357 = vmatpush1.msra.mxu0 %v331
    %358 = vmatprep.subr.mxu0 0.0
    %359 = vmatpush1.msra.mxu0 %v330
    %360 = vmatprep.subr.mxu0 0.0
    %361 = vmatpush1.msra.mxu0 %v329
    %362 = vmatprep.subr.mxu0 0.0
    %363 = vmatpush1.msra.mxu0 %v328
    %364 = vmatprep.subr.mxu0 0.0
    %365 = vmatpush1.msra.mxu0 %v327
    %366 = vmatprep.subr.mxu0 0.0
    %367 = vmatpush1.msra.mxu0 %v326
    %368 = vmatprep.subr.mxu0 0.0
    %369 = vmatpush1.msra.mxu0 %v325
    %370 = vmatprep.subr.mxu0 0.0
    %371 = vmatpush1.msra.mxu0 %v324
    %372 = vmatprep.subr.mxu0 0.0
    %373 = vmatpush2.msra.mxu0 0.0
    %374 = vmatprep.subr.mxu0 0.0
    %375 = vmatpush2.msra.mxu0 0.0
    %376 = vmatprep.subr.mxu0 0.0
    %377 = vmatpush2.msra.mxu0 0.0
    %378 = vmatprep.subr.mxu0 0.0
    %379 = vmatpush2.msra.mxu0 0.0
    %380 = vmatprep.subr.mxu0 0.0
    %381 = vmatpush2.msra.mxu0 0.0
    %382 = vmatprep.subr.mxu0 0.0
    %383 = vmatpush2.msra.mxu0 0.0
    %384 = vmatprep.subr.mxu0 0.0
    %385 = vmatpush2.msra.mxu0 0.0
    %386 = vmatprep.subr.mxu0 0.0
    %387 = vmatpush2.msra.mxu0 0.0
    %388 = vmatprep.subr.mxu0 0.0
    %389 = vmatpush2.msra.mxu0 0.0
    %390 = vmatprep.subr.mxu0 0.0
    %391 = vmatpush2.msra.mxu0 0.0
    %392 = vmatprep.subr.mxu0 0.0
    %393 = vmatpush2.msra.mxu0 0.0
    %394 = vmatprep.subr.mxu0 0.0
    %395 = vmatpush2.msra.mxu0 0.0
    %396 = vmatprep.subr.mxu0 0.0
    %397 = vmatpush2.msra.mxu0 0.0
    %398 = vmatprep.subr.mxu0 0.0
    %399 = vmatpush2.msra.mxu0 0.0
    %400 = vmatprep.subr.mxu0 0.0
    %401 = vmatpush2.msra.mxu0 0.0
    %402 = vmatprep.subr.mxu0 0.0
    %403 = vmatpush2.msra.mxu0 0.0
    %404 = vmatprep.mubr.f32.mxu0 0.0
    %405 = vmatmul.mubr.f32.gmra.mxu0 %v322
    %v406 = vpop.f32.mrf.mxu0
    %v407 = vadd.f32 0.0, %v406
    %v408 = vpop.f32.mrf.mxu0
    %409 = vmatprep.mubr.f32.mxu0 0.0
    %410 = vmatmul.mubr.f32.gmra.mxu0 %v323
    %v411 = vpop.f32.mrf.mxu0
    %v412 = vadd.f32 0.0, %v411
    %v413 = vpop.f32.mrf.mxu0
    %414 = vdwg.mxu0
    %415 = vst [vmem:[#allocation2] sm:$0xff] %v407
    %416 = vst [vmem:[#allocation2 + $0x8] sm:$0xff] %v412
    // Predicated region
    $region30: #{_lambda_.3} parent=1 // pred_check
      _
    $region31: #{_lambda_.3} parent=1 // pred_check_branch
      %418 = sbr.rel (0) target = $region33
    $region32: #{_lambda_.3} parent=1 // pred_region
      %s420 = ssub.s32 256, 256
      %421 = vsyncadd [#allocation3], %s420
      %s422 = sshll.u32 [#allocation2], 4
      %s423 = int_to_ptr.vmem [resolvable:$true] %s422
      %428 = dma.vmem_to_hbm [thread:$0]  %s423, 256, %s7, [#allocation3], 128, 128, 8
    $region33: #{_lambda_.3} parent=1 // pred_fallthru
      _
    // Predicated region
    $region34: #{_lambda_.3} parent=1 // pred_check
      _
    $region35: #{_lambda_.3} parent=1 // pred_check_branch
      %430 = sbr.rel (0) target = $region37
    $region36: #{_lambda_.3} parent=1 // pred_region
      %431 = dma.done [#allocation3], 256
    $region37: #{_lambda_.3} parent=1 // pred_fallthru
      _
    %432 = vsyncpa [#allocation3], 1

</llo_original>
